<compile_context>
chip_gen: v5e
topology: v5e:2x2
jax: 0.10.0
libtpu: 0.0.40
codegen_flags: <defaults>
</compile_context>

<pallas_src>
import jax
import jax.numpy as jnp
from jax import lax
from jax.experimental import pallas as pl
from jax.experimental.pallas import tpu as pltpu


def _attn_dropout_kernel(fscal_ref, thr_ref, bits_ref, q_ref, k_ref, v_ref, o_ref):
    # Scalars (precomputed in the wrapper, read from SMEM before vector work).
    rscale = fscal_ref[0]        # 1 / inv_scale_factor
    inv_keep = fscal_ref[1]      # 1 / (1 - dropout_p)   (0 if p == 1)
    thr = thr_ref[0]             # int32 threshold ~ p * 2^31

    # Scale the smaller (Sq, Dqk) tile instead of the (Sq, Sk) score tile.
    q = q_ref[...] * rscale                          # (Sq, Dqk) f32
    k = k_ref[...]                                   # (Sk, Dqk) f32
    v = v_ref[...]                                   # (Sk, Dv)  f32

    # scores = (q / inv_scale) @ k^T   -> (Sq, Sk), contraction over Dqk.
    s = lax.dot_general(
        q, k, (((1,), (1,)), ((), ())), preferred_element_type=jnp.float32
    )

    # Numerically-stable softmax over the last axis (divide-free).
    m = jnp.max(s, axis=-1, keepdims=True)
    e = jnp.exp(s - m)
    l = jnp.sum(e, axis=-1, keepdims=True)
    row_scale = pl.reciprocal(l, approx=True) * inv_keep     # (Sq, 1)

    # Dropout: keep iff random 31-bit int >= threshold (P(drop) ~= p).
    keep = bits_ref[...] >= thr                               # (Sq, Sk) bool
    p_drop = jnp.where(keep, e * row_scale, 0.0)              # (Sq, Sk)

    # output = dropped_probs @ value -> (Sq, Dv)
    o_ref[...] = jnp.dot(
        p_drop, v, preferred_element_type=jnp.float32
    ).astype(o_ref.dtype)


def attention_dropout(query, key, value, inv_scale_factor, dropout_p, seed=0):
    """query/key: (B, S, Dqk); value: (B, S, Dv); B must be 1 (matches the module)."""
    B, Sq, Dqk = query.shape
    _, Sk, Dv = value.shape
    assert key.shape == (B, Sk, Dqk)
    assert B == 1  # spec uses a single (1, 12, *) problem; squeeze the batch dim

    q2 = query.reshape(Sq, Dqk).astype(jnp.float32)
    k2 = key.reshape(Sk, Dqk).astype(jnp.float32)
    v2 = value.reshape(Sk, Dv).astype(jnp.float32)

    # Scalar prep in the wrapper (free relative to the kernel).
    inv_scale = jnp.asarray(inv_scale_factor, jnp.float32).reshape(())
    p = jnp.clip(jnp.asarray(dropout_p, jnp.float32).reshape(()), 0.0, 1.0)
    rscale = 1.0 / inv_scale
    inv_keep = jnp.where(p < 1.0, 1.0 / (1.0 - p), 0.0)
    fscal = jnp.stack([rscale, inv_keep]).astype(jnp.float32)         # SMEM f32[2]

    # 31-bit threshold and 31-bit random ints (signed compare == unsigned here).
    thr = jnp.minimum(p * jnp.float32(2.0**31), jnp.float32(2**31 - 128))
    thr = thr.astype(jnp.int32).reshape((1,))                          # SMEM i32[1]
    bits_u32 = jax.random.bits(jax.random.PRNGKey(seed), (Sq, Sk), dtype=jnp.uint32)
    bits31 = lax.shift_right_logical(bits_u32, jnp.uint32(1)).astype(jnp.int32)

    smem_spec = pl.BlockSpec(memory_space=pltpu.MemorySpace.SMEM)
    vmem_spec = pl.BlockSpec(memory_space=pltpu.MemorySpace.VMEM)

    out2d = pl.pallas_call(
        _attn_dropout_kernel,
        out_shape=jax.ShapeDtypeStruct((Sq, Dv), jnp.float32),
        in_specs=[smem_spec, smem_spec, vmem_spec, vmem_spec, vmem_spec, vmem_spec],
        out_specs=vmem_spec,
    )(fscal, thr, bits31, q2, k2, v2)

    return out2d.reshape(B, Sq, Dv)


if __name__ == "__main__":
    rng = jax.random.PRNGKey(0)
    kq, kk, kv = jax.random.split(rng, 3)

    # Shapes from the PyTorch snippet.
    query = jax.random.normal(kq, (1, 12, 8), dtype=jnp.float32)
    key = jax.random.normal(kk, (1, 12, 8), dtype=jnp.float32)
    value = jax.random.normal(kv, (1, 12, 10), dtype=jnp.float32)
    inv_scale_factor = jnp.float32(0.5)
    dropout_p = jnp.float32(0.5)

    out = attention_dropout(query, key, value, inv_scale_factor, dropout_p, seed=0)
    out = jax.block_until_ready(out)
    assert out.shape == (1, 12, 10)
    assert jnp.isfinite(out).all()
    print("KERNEL_OK")
</pallas_src>

<mosaic_0001>
module attributes {stable_mosaic.version = 11 : i64} {
  func.func @_attn_dropout_kernel(%arg0: memref<2xf32, #tpu.memory_space<smem>>, %arg1: memref<1xi32, #tpu.memory_space<smem>>, %arg2: memref<12x12xi32, #tpu.memory_space<vmem>>, %arg3: memref<12x8xf32, #tpu.memory_space<vmem>>, %arg4: memref<12x8xf32, #tpu.memory_space<vmem>>, %arg5: memref<12x10xf32, #tpu.memory_space<vmem>>, %arg6: memref<12x10xf32, #tpu.memory_space<vmem>>) attributes {dimension_semantics = [], scalar_prefetch = 0 : i64, scratch_operands = 0 : i64, tpu.core_type = #tpu.core_type<tc>} {
    %c0 = arith.constant 0 : index
    %0 = memref.load %arg0[%c0] : memref<2xf32, #tpu.memory_space<smem>>
    %c1 = arith.constant 1 : index
    %1 = memref.load %arg0[%c1] : memref<2xf32, #tpu.memory_space<smem>>
    %c0_0 = arith.constant 0 : index
    %2 = memref.load %arg1[%c0_0] : memref<1xi32, #tpu.memory_space<smem>>
    %c0_1 = arith.constant 0 : index
    %c0_2 = arith.constant 0 : index
    %3 = vector.load %arg3[%c0_1, %c0_2] : memref<12x8xf32, #tpu.memory_space<vmem>>, vector<12x8xf32>
    %4 = vector.broadcast %0 : f32 to vector<12x8xf32>
    %5 = arith.mulf %3, %4 : vector<12x8xf32>
    %c0_3 = arith.constant 0 : index
    %c0_4 = arith.constant 0 : index
    %6 = vector.load %arg4[%c0_3, %c0_4] : memref<12x8xf32, #tpu.memory_space<vmem>>, vector<12x8xf32>
    %c0_5 = arith.constant 0 : index
    %c0_6 = arith.constant 0 : index
    %7 = vector.load %arg5[%c0_5, %c0_6] : memref<12x10xf32, #tpu.memory_space<vmem>>, vector<12x10xf32>
    %cst = arith.constant dense<0.000000e+00> : vector<12x12xf32>
    %8 = tpu.matmul %5, %6, %cst {dimension_numbers = #tpu.dot_dimension_numbers<[1], [1], [0], [0], [0, 0, 1, 0], [], []>} : vector<12x8xf32>, vector<12x8xf32>, vector<12x12xf32> -> vector<12x12xf32>
    %cst_7 = arith.constant dense<0xFF800000> : vector<12xf32>
    %9 = vector.multi_reduction <maximumf>, %8, %cst_7 [1] : vector<12x12xf32> to vector<12xf32>
    %10 = vector.shape_cast %9 : vector<12xf32> to vector<12x1xf32>
    %11 = vector.broadcast %10 : vector<12x1xf32> to vector<12x12xf32>
    %12 = arith.subf %8, %11 : vector<12x12xf32>
    %13 = math.exp %12 : vector<12x12xf32>
    %cst_8 = arith.constant dense<0.000000e+00> : vector<12xf32>
    %14 = vector.multi_reduction <add>, %13, %cst_8 [1] : vector<12x12xf32> to vector<12xf32>
    %15 = vector.shape_cast %14 : vector<12xf32> to vector<12x1xf32>
    %16 = tpu.reciprocal %15 {approx = true} : vector<12x1xf32> -> vector<12x1xf32>
    %17 = vector.broadcast %1 : f32 to vector<12x1xf32>
    %18 = arith.mulf %16, %17 : vector<12x1xf32>
    %c0_9 = arith.constant 0 : index
    %c0_10 = arith.constant 0 : index
    %19 = vector.load %arg2[%c0_9, %c0_10] : memref<12x12xi32, #tpu.memory_space<vmem>>, vector<12x12xi32>
    %20 = vector.broadcast %2 : i32 to vector<12x12xi32>
    %21 = arith.cmpi sge, %19, %20 : vector<12x12xi32>
    %22 = vector.broadcast %18 : vector<12x1xf32> to vector<12x12xf32>
    %23 = arith.mulf %13, %22 : vector<12x12xf32>
    %cst_11 = arith.constant 0.000000e+00 : f32
    %24 = vector.broadcast %cst_11 : f32 to vector<12x12xf32>
    %25 = arith.select %21, %23, %24 : vector<12x12xi1>, vector<12x12xf32>
    %cst_12 = arith.constant dense<0.000000e+00> : vector<12x10xf32>
    %26 = tpu.matmul %25, %7, %cst_12 {dimension_numbers = #tpu.dot_dimension_numbers<[1], [0], [0], [1], [0, 0, 1, 1], [], []>} : vector<12x12xf32>, vector<12x10xf32>, vector<12x10xf32> -> vector<12x10xf32>
    %c0_13 = arith.constant 0 : index
    %c0_14 = arith.constant 0 : index
    %27 = vector.load %arg6[%c0_13, %c0_14] : memref<12x10xf32, #tpu.memory_space<vmem>>, vector<12x10xf32>
    tpu.vector_store %arg6[%c0_13, %c0_14], %26 {strides = array<i32>} : memref<12x10xf32, #tpu.memory_space<vmem>>, vector<12x10xf32>,
    return
  }
}

</mosaic_0001>

<llo_original>
// kernel: tpu_custom_call.1
$region0: #{tpu_custom_call.1}
  #allocation0 [shape = 'u32[]', space=smem, size = 0x4, offset = 0x4, fixed_abs, tag = 'smem constant byte address 0x4 - core index']
  #allocation1 [shape = 'u32[72,128]{1,0:T(1,128)}', space=vmem, size = 0x9000, scoped, tag = 'internal scratch']
  #allocation2 [shape = 's32[1]{0:T(128)S(6)}', space=smem, size = 0x200, scoped, tag = 'scoped memory for tpu_custom_call.1']
  %s0 = inlined_call_operand.vmem [shape: f32[2], index: 0, kind: input, shape index: {}]
  %s1 = inlined_call_operand.<no memory space> [shape: s32[1], index: 1, kind: input, shape index: {}]
  %s2 = inlined_call_operand.vmem [shape: s32[12,12], index: 2, kind: input, shape index: {}]
  %s3 = inlined_call_operand.vmem [shape: f32[12,8], index: 3, kind: input, shape index: {}]
  %s4 = inlined_call_operand.vmem [shape: f32[12,8], index: 4, kind: input, shape index: {}]
  %s5 = inlined_call_operand.vmem [shape: f32[12,10], index: 5, kind: input, shape index: {}]
  %s6 = inlined_call_operand.hbm [shape: f32[12,10], index: 6, kind: output, shape index: {}]
  %s7 = sld [smem:[#allocation0]]
  $region38: #{tpu_custom_call.1} parent=0
    _
  %s9 = ssub.s32 1, %s7
  %s10 = scalar_select 0, %s9, %s7
  %11 = sst [smem:[#allocation2]] %s1
  $region1: #{tpu_custom_call.1} parent=0
    #allocation3 [shape = 'u8[512]{0}', space=smem, size = 0x200, scoped, tag = 'input window, operand 0, single buffered']
    #allocation4 [shape = 's32[1]{0}', space=sflag, size = 0x4, scoped, tag = 'scoped memory for tpu_custom_call.1']
    #allocation5 [shape = 's32[1]{0}', space=sflag, size = 0x4, scoped, tag = 'scoped memory for tpu_custom_call.1']
    #allocation6 [shape = 'u8[8192]{0}', space=vmem, size = 0x2000, scoped, tag = 'output window, operand 0, single buffered']
    %12 = vsyncpa [#allocation5], 0
    %13 = vsyncpa [#allocation4], 0
    // Predicated region
    $region2: #{tpu_custom_call.1} parent=1 // pred_check
      _
    $region3: #{tpu_custom_call.1} parent=1 // pred_check_branch
      %15 = sbr.rel (0) target = $region5
    $region4: #{tpu_custom_call.1} parent=1 // pred_region
      %17 = vsyncadd [#allocation5], 0
      %s19 = sshll.u32 %s0, 4
      %s20 = int_to_ptr.vmem [resolvable:$true] %s19
      %22 = dma.vmem_to_smem %s20, 16, [#allocation3], [#allocation5]
    $region5: #{tpu_custom_call.1} parent=1 // pred_fallthru
      _
    // Predicated region
    $region6: #{tpu_custom_call.1} parent=1 // pred_check
      _
    $region7: #{tpu_custom_call.1} parent=1 // pred_check_branch
      %24 = sbr.rel (0) target = $region9
    $region8: #{tpu_custom_call.1} parent=1 // pred_region
      _
    $region9: #{tpu_custom_call.1} parent=1 // pred_fallthru
      _
    // Predicated region
    $region10: #{tpu_custom_call.1} parent=1 // pred_check
      _
    $region11: #{tpu_custom_call.1} parent=1 // pred_check_branch
      %26 = sbr.rel (0) target = $region13
    $region12: #{tpu_custom_call.1} parent=1 // pred_region
      _
    $region13: #{tpu_custom_call.1} parent=1 // pred_fallthru
      _
    // Predicated region
    $region14: #{tpu_custom_call.1} parent=1 // pred_check
      _
    $region15: #{tpu_custom_call.1} parent=1 // pred_check_branch
      %28 = sbr.rel (0) target = $region17
    $region16: #{tpu_custom_call.1} parent=1 // pred_region
      _
    $region17: #{tpu_custom_call.1} parent=1 // pred_fallthru
      _
    // Predicated region
    $region18: #{tpu_custom_call.1} parent=1 // pred_check
      _
    $region19: #{tpu_custom_call.1} parent=1 // pred_check_branch
      %30 = sbr.rel (0) target = $region21
    $region20: #{tpu_custom_call.1} parent=1 // pred_region
      _
    $region21: #{tpu_custom_call.1} parent=1 // pred_fallthru
      _
    // Predicated region
    $region22: #{tpu_custom_call.1} parent=1 // pred_check
      _
    $region23: #{tpu_custom_call.1} parent=1 // pred_check_branch
      %32 = sbr.rel (0) target = $region25
    $region24: #{tpu_custom_call.1} parent=1 // pred_region
      _
    $region25: #{tpu_custom_call.1} parent=1 // pred_fallthru
      _
    // Predicated region
    $region26: #{tpu_custom_call.1} parent=1 // pred_check
      _
    $region27: #{tpu_custom_call.1} parent=1 // pred_check_branch
      %34 = sbr.rel (0) target = $region29
    $region28: #{tpu_custom_call.1} parent=1 // pred_region
      %36 = dma.done [#allocation5], 16
    $region29: #{tpu_custom_call.1} parent=1 // pred_fallthru
      _
    %37 = sfence
    %s38 = sld [smem:[#allocation3]]
    %s39 = sld [smem:[#allocation3 + $0x1]]
    %s40 = sld [smem:[#allocation2]]
    %v41 = vld [vmem:[%s3] sm:$0xff]
    %v42 = vld [vmem:[%s3 + $0x8] sm:$0xf]
    %v43 = vstv %s38
    %v44 = vmul.f32 %v41, %v43
    %v45 = vmul.f32 %v42, %v43
    %v46 = vld [vmem:[%s4] sm:$0xff]
    %v47 = vld [vmem:[%s4 + $0x8] sm:$0xf]
    %v48 = vld [vmem:[%s5] sm:$0xff]
    %v49 = vld [vmem:[%s5 + $0x8] sm:$0xf]
    %vm50 = vcmask 64512
    %v52 = vsel %vm50, %v44, 0
    %v55 = vsel %vm50, %v45, 0
    %v58 = vsel %vm50, %v46, 0
    %v61 = vsel %vm50, %v47, 0
    %63 = vmatpush.xpose.msra.mxu0 0.0
    %64 = vmatpush.xpose.msra.mxu0 0.0
    %65 = vmatpush.xpose.msra.mxu0 0.0
    %66 = vmatpush.xpose.msra.mxu0 0.0
    %67 = vmatpush.xpose.msra.mxu0 0.0
    %68 = vmatpush.xpose.msra.mxu0 0.0
    %69 = vmatpush.xpose.msra.mxu0 0.0
    %70 = vmatpush.xpose.msra.mxu0 0.0
    %71 = vmatpush.xpose.msra.mxu0 0.0
    %72 = vmatpush.xpose.msra.mxu0 0.0
    %73 = vmatpush.xpose.msra.mxu0 0.0
    %74 = vmatpush.xpose.msra.mxu0 0.0
    %75 = vmatpush.xpose.msra.mxu0 0.0
    %76 = vmatpush.xpose.msra.mxu0 0.0
    %77 = vmatpush.xpose.msra.mxu0 %v61
    %78 = vmatpush.xpose.msra.mxu0 %v58
    %79 = vmatmul.f32.gmra.mxu0 %v52
    %v80 = vpop.f32.mrf.mxu0
    %v81 = vadd.f32 0.0, %v80
    %82 = vmatmul.f32.gmra.mxu0 %v55
    %v83 = vpop.f32.mrf.mxu0
    %v84 = vadd.f32 0.0, %v83
    %85 = vdwg.mxu0
    %vm86 = vcmask 97280
    %v87 = vsel %vm86, %v81, -inf
    %88 = vmax.xlane.f32.xlu0 %v87
    %v89 = vpop.xlane.xlu0 %88
    %vm90 = vcmask 93184
    %v91 = vsel %vm90, %v84, -inf
    %92 = vmax.xlane.f32.xlu0 %v91
    %v93 = vpop.xlane.xlu0 %92
    %v94 = vsub.f32 %v81, %v89
    %v95 = vsub.f32 %v84, %v93
    %v96 = vmul.f32 %v94, 1.442695
    %v97 = vpow.pop %v96
    %v98 = vmul.f32 %v95, 1.442695
    %v99 = vpow.pop %v98
    %v100 = vsel %vm86, %v97, 0.0
    %101 = vadd.xlane.f32.xlu0 %v100
    %v102 = vpop.xlane.xlu0 %101
    %v103 = vsel %vm90, %v99, 0.0
    %104 = vadd.xlane.f32.xlu0 %v103
    %v105 = vpop.xlane.xlu0 %104
    %v106 = vrcp.pop %v102
    %v107 = vrcp.pop %v105
    %v108 = vstv %s39
    %v109 = vmul.f32 %v106, %v108
    %v110 = vmul.f32 %v107, %v108
    %v111 = vld [vmem:[%s2] sm:$0xff]
    %v112 = vld [vmem:[%s2 + $0x8] sm:$0xf]
    %v113 = vstv %s40
    %vm114 = vcmp.ge.s32.totalorder %v111, %v113
    %vm115 = vcmp.ge.s32.totalorder %v112, %v113
    %v116 = vmul.f32 %v97, %v109
    %v117 = vmul.f32 %v99, %v110
    %v118 = vsel %vm114, %v116, 0.0
    %v119 = vsel %vm115, %v117, 0.0
    %v121 = vsel %vm86, %v118, 0
    %v124 = vsel %vm86, %v119, 0
    %vm126 = vcmask 1043456
    %v128 = vsel %vm126, %v49, 0
    %130 = vmatpush.msra.mxu0 0.0
    %131 = vmatpush.msra.mxu0 0.0
    %132 = vmatpush.msra.mxu0 0.0
    %133 = vmatpush.msra.mxu0 0.0
    %134 = vmatpush.msra.mxu0 0.0
    %135 = vmatpush.msra.mxu0 0.0
    %136 = vmatpush.msra.mxu0 0.0
    %137 = vmatpush.msra.mxu0 0.0
    %138 = vmatpush.msra.mxu0 0.0
    %139 = vmatpush.msra.mxu0 0.0
    %140 = vmatpush.msra.mxu0 0.0
    %141 = vmatpush.msra.mxu0 0.0
    %142 = vmatpush.msra.mxu0 0.0
    %143 = vmatpush.msra.mxu0 0.0
    %144 = vmatpush.msra.mxu0 %v128
    %145 = vmatpush.msra.mxu0 %v48
    %146 = vmatmul.f32.gmra.mxu0 %v121
    %v147 = vpop.f32.mrf.mxu0
    %v148 = vadd.f32 0.0, %v147
    %149 = vmatmul.f32.gmra.mxu0 %v124
    %v150 = vpop.f32.mrf.mxu0
    %v151 = vadd.f32 0.0, %v150
    %152 = vdwg.mxu0
    %vm153 = vcmask 80896
    %154 = vst.msk [vmem:[#allocation6] sm:$0xff] %vm153, %v148
    %vm155 = vcmask 76800
    %156 = vst.msk [vmem:[#allocation6 + $0x8] sm:$0xf] %vm155, %v151
    // Predicated region
    $region30: #{tpu_custom_call.1} parent=1 // pred_check
      _
    $region31: #{tpu_custom_call.1} parent=1 // pred_check_branch
      %158 = sbr.rel (0) target = $region33
    $region32: #{tpu_custom_call.1} parent=1 // pred_region
      %160 = vsyncadd [#allocation4], 0
      %s161 = sshll.u32 [#allocation6], 4
      %s162 = int_to_ptr.vmem [resolvable:$true] %s161
      %s163 = sshll.u32 %s6, 4
      %s164 = int_to_ptr.hbm [resolvable:$true] %s163
      %169 = dma.vmem_to_hbm [thread:$0]  %s162, 256, %s164, [#allocation4], 128, 128, 8
    $region33: #{tpu_custom_call.1} parent=1 // pred_fallthru
      _
    // Predicated region
    $region34: #{tpu_custom_call.1} parent=1 // pred_check
      _
    $region35: #{tpu_custom_call.1} parent=1 // pred_check_branch
      %171 = sbr.rel (0) target = $region37
    $region36: #{tpu_custom_call.1} parent=1 // pred_region
      %173 = dma.done [#allocation4], 256
    $region37: #{tpu_custom_call.1} parent=1 // pred_fallthru
      _
    %174 = vsyncpa [#allocation4], 1
    %175 = vsyncpa [#allocation5], 1

</llo_original>
